<compile_context>
chip_gen: v7x
topology: tpu7x:2x2x1
jax: 0.10.0
libtpu: 0.0.40
codegen_flags: <defaults>
</compile_context>

<pallas_src>
import functools

import jax
import jax.numpy as jnp
from jax import lax
from jax.experimental import pallas as pl
from jax.experimental.pallas import tpu as pltpu
import numpy as np


# Budget against the smallest generation (v7x: 64 MiB physical / 32 MiB default
# scoped VMEM); each pipelined input is double-buffered but tiles here are tiny.
VMEM_LIMIT_BYTES = 32 * 1024 * 1024


# ----------------------------- query encoder ------------------------------- #
def encoder_kernel(emb_ref, mask_ref, w_ref, b_ref, out_ref):
    # emb_ref : (TB, L, H) f32   token embeddings, one batch tile
    # mask_ref: (TB, L)    f32   attention mask in {0, 1}
    # w_ref   : (H, H)     bf16  pooler projection (bf16 feeds the MXU)
    # b_ref   : (1, H)     f32   pooler bias
    # out_ref : (TB, H)    f32   pooled representation (lane-dense, H = 128)
    emb = emb_ref[...]
    mask = mask_ref[...]
    msum = jnp.sum(mask, axis=1, keepdims=True)                  # (TB, 1)
    # NOTE: divides by zero for an all-zero mask row (same as the reference).
    pooled = jnp.sum(emb * mask[:, :, None], axis=1) / msum      # (TB, H) f32
    proj = jnp.dot(pooled.astype(jnp.bfloat16), w_ref[...],
                   preferred_element_type=jnp.float32)           # MXU, f32 acc
    out_ref[...] = jnp.tanh(proj + b_ref[...])


def encode(emb, mask, w_bf16, b, *, batch_tile=8):
    """Masked mean pool + projection + tanh, grid-tiled over the batch axis."""
    B, L, H = emb.shape
    TB = min(batch_tile, B)
    return pl.pallas_call(
        encoder_kernel,
        out_shape=jax.ShapeDtypeStruct((B, H), jnp.float32),
        grid_spec=pltpu.PrefetchScalarGridSpec(
            num_scalar_prefetch=0,
            grid=(pl.cdiv(B, TB),),
            in_specs=[
                pl.BlockSpec((TB, L, H), lambda i: (i, 0, 0)),   # batch tile
                pl.BlockSpec((TB, L), lambda i: (i, 0)),
                pl.BlockSpec((H, H), lambda i: (0, 0)),          # weights resident
                pl.BlockSpec((1, H), lambda i: (0, 0)),
            ],
            out_specs=pl.BlockSpec((TB, H), lambda i: (i, 0)),
        ),
        compiler_params=pltpu.CompilerParams(
            dimension_semantics=("parallel",),      # shard over the 2 TCs on v7x
            vmem_limit_bytes=VMEM_LIMIT_BYTES,
        ),
    )(emb, mask, w_bf16, b)


# ------------------ fused context encoder + score / loss ------------------- #
def ctx_encode_score_kernel(emb_ref, mask_ref, w_ref, b_ref, qry_ref, pos_ref,
                            loss_ref, acc_ref, m_sc, l_sc, pos_sc, *, total_c):
    # emb_ref : (TC, L, H) f32   context embeddings, one context tile
    # mask_ref: (TC, L)    f32
    # w_ref   : (H, H)     bf16  ctx pooler projection
    # b_ref   : (1, H)     f32
    # qry_ref : (Q, H)     f32   query reps (resident every step)
    # pos_ref : (Q, 1)     i32   positive context index per query
    # loss_ref: (1, 1)     f32   SMEM scalar output (NLL loss)
    # acc_ref : (1, 1)     f32   SMEM scalar output (accuracy)
    # m_sc/l_sc/pos_sc : (Q, 1) f32 VMEM scratch (running max / sum-exp / pos logit)
    k = pl.program_id(0)

    @pl.when(k == 0)
    def _init():
        m_sc[...] = jnp.full(m_sc.shape, -jnp.inf, dtype=m_sc.dtype)
        l_sc[...] = jnp.zeros(l_sc.shape, dtype=l_sc.dtype)
        pos_sc[...] = jnp.zeros(pos_sc.shape, dtype=pos_sc.dtype)

    # --- encode this context tile (masked mean pool -> dense -> tanh) ---
    emb = emb_ref[...]
    mask = mask_ref[...]
    msum = jnp.sum(mask, axis=1, keepdims=True)
    pooled = jnp.sum(emb * mask[:, :, None], axis=1) / msum          # (TC, H)
    proj = jnp.dot(pooled.astype(jnp.bfloat16), w_ref[...],
                   preferred_element_type=jnp.float32)
    ctx_rep = jnp.tanh(proj + b_ref[...])                            # (TC, H) f32

    # --- online log-softmax scoring against the resident query reps ---
    q = qry_ref[...].astype(jnp.bfloat16)                            # (Q, H)
    # Contract dim 1 of both operands: no explicit transpose of ctx_rep.
    logits_raw = lax.dot_general(
        q, ctx_rep.astype(jnp.bfloat16),
        dimension_numbers=(((1,), (1,)), ((), ())),
        preferred_element_type=jnp.float32)                          # (Q, TC)
    Q, TC = logits_raw.shape
    col = k * TC + lax.broadcasted_iota(jnp.int32, (Q, TC), 1)
    logits = jnp.where(col < total_c, logits_raw, -jnp.inf)          # mask padding

    m_new = jnp.maximum(m_sc[...], jnp.max(logits, axis=1, keepdims=True))
    l_sc[...] = (l_sc[...] * jnp.exp(m_sc[...] - m_new)
                 + jnp.sum(jnp.exp(logits - m_new), axis=1, keepdims=True))
    m_sc[...] = m_new
    pos_hit = col == pos_ref[...]
    pos_sc[...] = pos_sc[...] + jnp.sum(
        jnp.where(pos_hit, logits_raw, 0.0), axis=1, keepdims=True)

    @pl.when(k == pl.num_programs(0) - 1)
    def _finalize():
        logprob_pos = pos_sc[...] - m_sc[...] - jnp.log(l_sc[...])   # (Q, 1)
        loss_ref[0, 0] = -jnp.sum(logprob_pos) / Q
        # prediction is argmax over contexts; correct iff the positive column
        # holds the row maximum (float ties are measure-zero with random reps)
        correct = (pos_sc[...] == m_sc[...]).astype(jnp.float32)
        acc_ref[0, 0] = jnp.sum(correct) / Q


def ctx_encode_and_score(emb_c, mask_c, w_bf16, b, qry_reps, positive_indices,
                         *, ctx_tile=8):
    C, L, H = emb_c.shape
    Q = qry_reps.shape[0]
    TC = min(ctx_tile, C)
    pos2d = positive_indices.astype(jnp.int32).reshape(Q, 1)
    kernel = functools.partial(ctx_encode_score_kernel, total_c=C)
    loss, acc = pl.pallas_call(
        kernel,
        out_shape=(jax.ShapeDtypeStruct((1, 1), jnp.float32),
                   jax.ShapeDtypeStruct((1, 1), jnp.float32)),
        grid_spec=pltpu.PrefetchScalarGridSpec(
            num_scalar_prefetch=0,
            grid=(pl.cdiv(C, TC),),
            in_specs=[
                pl.BlockSpec((TC, L, H), lambda k: (k, 0, 0)),   # ctx tile
                pl.BlockSpec((TC, L), lambda k: (k, 0)),
                pl.BlockSpec((H, H), lambda k: (0, 0)),          # weights resident
                pl.BlockSpec((1, H), lambda k: (0, 0)),
                pl.BlockSpec((Q, H), lambda k: (0, 0)),          # qry reps resident
                pl.BlockSpec((Q, 1), lambda k: (0, 0)),
            ],
            out_specs=(pl.BlockSpec(memory_space=pltpu.MemorySpace.SMEM),
                       pl.BlockSpec(memory_space=pltpu.MemorySpace.SMEM)),
            scratch_shapes=[pltpu.VMEM((Q, 1), jnp.float32)] * 3,
        ),
        compiler_params=pltpu.CompilerParams(
            dimension_semantics=("arbitrary",),   # online softmax is sequential in C
            vmem_limit_bytes=VMEM_LIMIT_BYTES,
        ),
    )(emb_c, mask_c, w_bf16, b, qry_reps, pos2d)
    return loss[0, 0], acc[0, 0]


# ------------------------------ BiEncoder ---------------------------------- #
class BiEncoderPallas:
    """Synthetic BiEncoder: two independent encoders + in-batch contrastive loss."""

    def __init__(self, vocab_size, hidden, key):
        k = jax.random.split(key, 6)
        scale = 0.02
        self.qry_emb = scale * jax.random.normal(k[0], (vocab_size, hidden), jnp.float32)
        self.qry_w = scale * jax.random.normal(k[1], (hidden, hidden), jnp.float32)
        self.qry_b = scale * jax.random.normal(k[2], (1, hidden), jnp.float32)
        self.ctx_emb = scale * jax.random.normal(k[3], (vocab_size, hidden), jnp.float32)
        self.ctx_w = scale * jax.random.normal(k[4], (hidden, hidden), jnp.float32)
        self.ctx_b = scale * jax.random.normal(k[5], (1, hidden), jnp.float32)

    def forward(self, input_ids_q, attention_mask_q, input_ids_c, attention_mask_c,
                positive_indices):
        # embedding lookups (glue, plain JAX gather)
        # TODO(synk): for tiny vocabularies this gather could itself be folded
        # into an MXU (one-hot @ table) matmul inside the kernel.
        emb_q = jnp.take(self.qry_emb, input_ids_q, axis=0)  # (Q, Lq, H)
        emb_c = jnp.take(self.ctx_emb, input_ids_c, axis=0)  # (C, Lc, H)
        qry_reps = encode(emb_q, attention_mask_q.astype(jnp.float32),
                          self.qry_w.astype(jnp.bfloat16), self.qry_b)  # (Q, H)
        # Context encoding and the score/loss are fused in one pallas_call: the
        # ctx reps never round-trip through HBM.
        loss, accuracy = ctx_encode_and_score(
            emb_c, attention_mask_c.astype(jnp.float32),
            self.ctx_w.astype(jnp.bfloat16), self.ctx_b,
            qry_reps, positive_indices)
        return loss, accuracy


# ------------------------------ reference ---------------------------------- #
def reference_forward(model, ids_q, mask_q, ids_c, mask_c, pos):
    # Mirrors the kernel's bf16 MXU operands (f32 accumulation) so the
    # comparison stays tight.
    def enc(emb_tab, w, b, ids, mask):
        e = jnp.take(emb_tab, ids, axis=0)
        m = mask.astype(jnp.float32)
        pooled = jnp.sum(e * m[:, :, None], axis=1) / jnp.sum(m, axis=1, keepdims=True)
        proj = jnp.dot(pooled.astype(jnp.bfloat16), w.astype(jnp.bfloat16),
                       preferred_element_type=jnp.float32)
        return jnp.tanh(proj + b)

    q = enc(model.qry_emb, model.qry_w, model.qry_b, ids_q, mask_q)
    c = enc(model.ctx_emb, model.ctx_w, model.ctx_b, ids_c, mask_c)
    logits = jnp.dot(q.astype(jnp.bfloat16), c.astype(jnp.bfloat16).T,
                     preferred_element_type=jnp.float32)
    logprobs = jax.nn.log_softmax(logits, axis=1)
    loss = -jnp.mean(logprobs[jnp.arange(q.shape[0]), pos])
    acc = jnp.mean((jnp.argmax(logprobs, axis=1) == pos).astype(jnp.float32))
    return loss, acc


# -------------------------------- main -------------------------------------- #
if __name__ == "__main__":
    VOCAB, HIDDEN = 64, 128
    Q, LQ = 8, 8        # queries x query seq length
    C, LC = 16, 16      # contexts x context seq length

    key = jax.random.PRNGKey(0)
    k_model, k_idq, k_idc, k_lenq, k_lenc, k_pos = jax.random.split(key, 6)

    model = BiEncoderPallas(VOCAB, HIDDEN, k_model)

    input_ids_q = jax.random.randint(k_idq, (Q, LQ), 0, VOCAB, dtype=jnp.int32)
    input_ids_c = jax.random.randint(k_idc, (C, LC), 0, VOCAB, dtype=jnp.int32)

    len_q = jax.random.randint(k_lenq, (Q, 1), 1, LQ + 1, dtype=jnp.int32)
    len_c = jax.random.randint(k_lenc, (C, 1), 1, LC + 1, dtype=jnp.int32)
    attention_mask_q = (jnp.arange(LQ)[None, :] < len_q).astype(jnp.int32)
    attention_mask_c = (jnp.arange(LC)[None, :] < len_c).astype(jnp.int32)

    positive_indices = jax.random.randint(k_pos, (Q,), 0, C, dtype=jnp.int32)

    loss, acc = model.forward(input_ids_q, attention_mask_q,
                              input_ids_c, attention_mask_c, positive_indices)
    loss = jax.block_until_ready(loss)
    acc = jax.block_until_ready(acc)

    ref_loss, ref_acc = reference_forward(model, input_ids_q, attention_mask_q,
                                          input_ids_c, attention_mask_c,
                                          positive_indices)
    np.testing.assert_allclose(np.asarray(loss), np.asarray(ref_loss),
                               rtol=5e-3, atol=5e-3)
    np.testing.assert_allclose(np.asarray(acc), np.asarray(ref_acc),
                               rtol=0.0, atol=1e-6)

    print("KERNEL_OK")
</pallas_src>

<mosaic_0001>
module attributes {stable_mosaic.version = 11 : i64} {
  func.func @encoder_kernel(%arg0: i32, %arg1: memref<8x8x128xf32, #tpu.memory_space<vmem>>, %arg2: memref<8x8xf32, #tpu.memory_space<vmem>>, %arg3: memref<128x128xbf16, #tpu.memory_space<vmem>>, %arg4: memref<1x128xf32, #tpu.memory_space<vmem>>, %arg5: memref<8x128xf32, #tpu.memory_space<vmem>>) attributes {dimension_semantics = [#tpu.dimension_semantics<parallel>], iteration_bounds = array<i64: 1>, scalar_prefetch = 0 : i64, scratch_operands = 0 : i64, tpu.core_type = #tpu.core_type<tc>, window_params = [{transform_indices = @transform_0, window_bounds = array<i64: 8, 8, 128>}, {transform_indices = @transform_1, window_bounds = array<i64: 8, 8>}, {pipeline_mode = #tpu.pipeline_mode<synchronous>, transform_indices = @transform_2, window_bounds = array<i64: 128, 128>}, {pipeline_mode = #tpu.pipeline_mode<synchronous>, transform_indices = @transform_3, window_bounds = array<i64: 1, 128>}, {transform_indices = @transform_4, window_bounds = array<i64: 8, 128>}]} {
    %c0 = arith.constant 0 : index
    %c0_0 = arith.constant 0 : index
    %c0_1 = arith.constant 0 : index
    %0 = vector.load %arg1[%c0, %c0_0, %c0_1] : memref<8x8x128xf32, #tpu.memory_space<vmem>>, vector<8x8x128xf32>
    %c0_2 = arith.constant 0 : index
    %c0_3 = arith.constant 0 : index
    %1 = vector.load %arg2[%c0_2, %c0_3] : memref<8x8xf32, #tpu.memory_space<vmem>>, vector<8x8xf32>
    %cst = arith.constant dense<0.000000e+00> : vector<8xf32>
    %2 = vector.multi_reduction <add>, %1, %cst [1] : vector<8x8xf32> to vector<8xf32>
    %3 = vector.shape_cast %2 : vector<8xf32> to vector<8x1xf32>
    %4 = vector.shape_cast %1 : vector<8x8xf32> to vector<8x8x1xf32>
    %5 = vector.broadcast %4 : vector<8x8x1xf32> to vector<8x8x128xf32>
    %6 = arith.mulf %0, %5 : vector<8x8x128xf32>
    %cst_4 = arith.constant dense<0.000000e+00> : vector<8x128xf32>
    %7 = vector.multi_reduction <add>, %6, %cst_4 [1] : vector<8x8x128xf32> to vector<8x128xf32>
    %8 = vector.broadcast %3 : vector<8x1xf32> to vector<8x128xf32>
    %9 = arith.divf %7, %8 : vector<8x128xf32>
    %10 = arith.truncf %9 : vector<8x128xf32> to vector<8x128xbf16>
    %c0_5 = arith.constant 0 : index
    %c0_6 = arith.constant 0 : index
    %11 = vector.load %arg3[%c0_5, %c0_6] : memref<128x128xbf16, #tpu.memory_space<vmem>>, vector<128x128xbf16>
    %cst_7 = arith.constant dense<0.000000e+00> : vector<8x128xf32>
    %12 = tpu.matmul %10, %11, %cst_7 {dimension_numbers = #tpu.dot_dimension_numbers<[1], [0], [0], [1], [0, 0, 1, 1], [], []>} : vector<8x128xbf16>, vector<128x128xbf16>, vector<8x128xf32> -> vector<8x128xf32>
    %c0_8 = arith.constant 0 : index
    %c0_9 = arith.constant 0 : index
    %13 = vector.load %arg4[%c0_8, %c0_9] : memref<1x128xf32, #tpu.memory_space<vmem>>, vector<1x128xf32>
    %14 = vector.broadcast %13 : vector<1x128xf32> to vector<8x128xf32>
    %15 = arith.addf %12, %14 : vector<8x128xf32>
    %16 = math.tanh %15 : vector<8x128xf32>
    %c0_10 = arith.constant 0 : index
    %c0_11 = arith.constant 0 : index
    %17 = vector.load %arg5[%c0_10, %c0_11] : memref<8x128xf32, #tpu.memory_space<vmem>>, vector<8x128xf32>
    tpu.vector_store %arg5[%c0_10, %c0_11], %16 {strides = array<i32>} : memref<8x128xf32, #tpu.memory_space<vmem>>, vector<8x128xf32>,
    return
  }
  func.func @transform_0(%arg0: i32) -> (i32, i32, i32) {
    %c0_i32 = arith.constant 0 : i32
    %c0_i32_0 = arith.constant 0 : i32
    %c0_i32_1 = arith.constant 0 : i32
    return %arg0, %c0_i32, %c0_i32_0 : i32, i32, i32
  }
  func.func @transform_1(%arg0: i32) -> (i32, i32) {
    %c0_i32 = arith.constant 0 : i32
    %c0_i32_0 = arith.constant 0 : i32
    return %arg0, %c0_i32 : i32, i32
  }
  func.func @transform_2(%arg0: i32) -> (i32, i32) {
    %c0_i32 = arith.constant 0 : i32
    %c0_i32_0 = arith.constant 0 : i32
    %c0_i32_1 = arith.constant 0 : i32
    return %c0_i32, %c0_i32_0 : i32, i32
  }
  func.func @transform_3(%arg0: i32) -> (i32, i32) {
    %c0_i32 = arith.constant 0 : i32
    %c0_i32_0 = arith.constant 0 : i32
    %c0_i32_1 = arith.constant 0 : i32
    return %c0_i32, %c0_i32_0 : i32, i32
  }
  func.func @transform_4(%arg0: i32) -> (i32, i32) {
    %c0_i32 = arith.constant 0 : i32
    %c0_i32_0 = arith.constant 0 : i32
    return %arg0, %c0_i32 : i32, i32
  }
}

</mosaic_0001>

<llo_original>
// kernel: tpu_custom_call.1
$region0: #{tpu_custom_call.1}
  #allocation0 [shape = 'u32[]', space=smem, size = 0x4, offset = 0x4, fixed_abs, tag = 'smem constant byte address 0x4 - core index']
  #allocation1 [shape = 'u32[144,128]{1,0:T(1,128)}', space=vmem, size = 0x12000, scoped, tag = 'internal scratch']
  %s0 = inlined_call_operand.hbm [shape: f32[8,8,128], index: 0, kind: input, shape index: {}]
  %s1 = inlined_call_operand.hbm [shape: f32[8,8], index: 1, kind: input, shape index: {}]
  %s2 = inlined_call_operand.hbm [shape: bf16[128,128], index: 2, kind: input, shape index: {}]
  %s3 = inlined_call_operand.vmem [shape: f32[1,128], index: 3, kind: input, shape index: {}]
  %s4 = inlined_call_operand.hbm [shape: f32[8,128], index: 4, kind: output, shape index: {}]
  %s5 = sld [smem:[#allocation0]]
  $region38: #{tpu_custom_call.1} parent=0
    _
  %s7 = ssub.s32 1, %s5
  %s8 = scalar_select 0, %s7, %s5
  $region1: #{tpu_custom_call.1} parent=0
    #allocation2 [shape = 'u8[32768]{0}', space=vmem, size = 0x8000, scoped, tag = 'input window, operand 0, single buffered']
    #allocation3 [shape = 's32[1]{0}', space=sflag, size = 0x4, scoped, tag = 'scoped memory for tpu_custom_call.1']
    #allocation4 [shape = 's32[1]{0}', space=sflag, size = 0x4, scoped, tag = 'scoped memory for tpu_custom_call.1']
    #allocation5 [shape = 'u8[4096]{0}', space=vmem, size = 0x1000, scoped, tag = 'input window, operand 1, single buffered']
    #allocation6 [shape = 's32[1]{0}', space=sflag, size = 0x4, scoped, tag = 'scoped memory for tpu_custom_call.1']
    #allocation7 [shape = 'u8[32768]{0}', space=vmem, size = 0x8000, scoped, tag = 'input window, operand 2, single buffered']
    #allocation8 [shape = 'u8[4096]{0}', space=vmem, size = 0x1000, scoped, tag = 'output window, operand 0, single buffered']
    %9 = vsyncpa [#allocation3], 0
    %10 = vsyncpa [#allocation6], 0
    %11 = vsyncpa [#allocation4], 0
    // Predicated region
    $region2: #{tpu_custom_call.1} parent=1 // pred_check
      _
    $region3: #{tpu_custom_call.1} parent=1 // pred_check_branch
      %13 = sbr.rel (0) target = $region5
    $region4: #{tpu_custom_call.1} parent=1 // pred_region
      %s15 = ssub.s32 1024, 1024
      %16 = vsyncadd [#allocation3], %s15
      %s17 = sshll.u32 [#allocation2], 4
      %s18 = int_to_ptr.vmem [resolvable:$true] %s17
      %23 = dma.hbm_to_vmem [thread:$0]  %s0, 1024, %s18, [#allocation3], 128, 128, 8
    $region5: #{tpu_custom_call.1} parent=1 // pred_fallthru
      _
    // Predicated region
    $region6: #{tpu_custom_call.1} parent=1 // pred_check
      _
    $region7: #{tpu_custom_call.1} parent=1 // pred_check_branch
      %25 = sbr.rel (0) target = $region9
    $region8: #{tpu_custom_call.1} parent=1 // pred_region
      %s27 = ssub.s32 128, 128
      %28 = vsyncadd [#allocation6], %s27
      %s30 = sshll.u32 [#allocation5], 4
      %s31 = int_to_ptr.vmem [resolvable:$true] %s30
      %33 = dma.hbm_to_vmem [thread:$0]  %s1, 128, %s31, [#allocation6]
    $region9: #{tpu_custom_call.1} parent=1 // pred_fallthru
      _
    // Predicated region
    $region10: #{tpu_custom_call.1} parent=1 // pred_check
      _
    $region11: #{tpu_custom_call.1} parent=1 // pred_check_branch
      %35 = sbr.rel (0) target = $region13
    $region12: #{tpu_custom_call.1} parent=1 // pred_region
      %s37 = ssub.s32 1024, 1024
      %38 = vsyncadd [#allocation6], %s37
      %s39 = sshll.u32 [#allocation7], 4
      %s40 = int_to_ptr.vmem [resolvable:$true] %s39
      %45 = dma.hbm_to_vmem [thread:$0]  %s2, 1024, %s40, [#allocation6], 64, 64, 4
    $region13: #{tpu_custom_call.1} parent=1 // pred_fallthru
      _
    // Predicated region
    $region14: #{tpu_custom_call.1} parent=1 // pred_check
      _
    $region15: #{tpu_custom_call.1} parent=1 // pred_check_branch
      %47 = sbr.rel (0) target = $region17
    $region16: #{tpu_custom_call.1} parent=1 // pred_region
      _
    $region17: #{tpu_custom_call.1} parent=1 // pred_fallthru
      _
    // Predicated region
    $region18: #{tpu_custom_call.1} parent=1 // pred_check
      _
    $region19: #{tpu_custom_call.1} parent=1 // pred_check_branch
      %49 = sbr.rel (0) target = $region21
    $region20: #{tpu_custom_call.1} parent=1 // pred_region
      %50 = dma.done [#allocation3], 1024
    $region21: #{tpu_custom_call.1} parent=1 // pred_fallthru
      _
    // Predicated region
    $region22: #{tpu_custom_call.1} parent=1 // pred_check
      _
    $region23: #{tpu_custom_call.1} parent=1 // pred_check_branch
      %52 = sbr.rel (0) target = $region25
    $region24: #{tpu_custom_call.1} parent=1 // pred_region
      %53 = dma.done [#allocation6], 128
    $region25: #{tpu_custom_call.1} parent=1 // pred_fallthru
      _
    // Predicated region
    $region26: #{tpu_custom_call.1} parent=1 // pred_check
      _
    $region27: #{tpu_custom_call.1} parent=1 // pred_check_branch
      %55 = sbr.rel (0) target = $region29
    $region28: #{tpu_custom_call.1} parent=1 // pred_region
      %56 = dma.done [#allocation6], 1024
    $region29: #{tpu_custom_call.1} parent=1 // pred_fallthru
      _
    %v58 = vld [vmem:[#allocation2] sm:$0xff]
    %v59 = vld [vmem:[#allocation2 + $0x8] sm:$0xff]
    %v60 = vld [vmem:[#allocation2 + $0x10] sm:$0xff]
    %v61 = vld [vmem:[#allocation2 + $0x18] sm:$0xff]
    %v62 = vld [vmem:[#allocation2 + $0x20] sm:$0xff]
    %v63 = vld [vmem:[#allocation2 + $0x28] sm:$0xff]
    %v64 = vld [vmem:[#allocation2 + $0x30] sm:$0xff]
    %v65 = vld [vmem:[#allocation2 + $0x38] sm:$0xff]
    %v66 = vld [vmem:[#allocation5] sm:$0xff]
    %vm67 = vcmask 64512
    %v68 = vsel %vm67, %v66, 0.0
    %69 = vadd.xlane.f32.xlu0 %v68
    %v70 = vpop.xlane.xlu0 %69
    %v71 = vlaneseq
    %v72 = vshrl.u32 %v71, 7
    %v73 = vsub.s32 0, %v72
    %v74 = vrot.slane %v66, %v73
    %76 = vbcast.lane.b32.xlu0 %v74, 256
    %v77 = vpop.permute.xlu0 %76
    %v78 = vlaneseq
    %v79 = vshrl.u32 %v78, 7
    %v80 = vsub.s32 1, %v79
    %v81 = vrot.slane %v66, %v80
    %83 = vbcast.lane.b32.xlu0 %v81, 256
    %v84 = vpop.permute.xlu0 %83
    %v85 = vlaneseq
    %v86 = vshrl.u32 %v85, 7
    %v87 = vsub.s32 2, %v86
    %v88 = vrot.slane %v66, %v87
    %90 = vbcast.lane.b32.xlu0 %v88, 256
    %v91 = vpop.permute.xlu0 %90
    %v92 = vlaneseq
    %v93 = vshrl.u32 %v92, 7
    %v94 = vsub.s32 3, %v93
    %v95 = vrot.slane %v66, %v94
    %97 = vbcast.lane.b32.xlu0 %v95, 256
    %v98 = vpop.permute.xlu0 %97
    %v99 = vlaneseq
    %v100 = vshrl.u32 %v99, 7
    %v101 = vsub.s32 4, %v100
    %v102 = vrot.slane %v66, %v101
    %104 = vbcast.lane.b32.xlu0 %v102, 256
    %v105 = vpop.permute.xlu0 %104
    %v106 = vlaneseq
    %v107 = vshrl.u32 %v106, 7
    %v108 = vsub.s32 5, %v107
    %v109 = vrot.slane %v66, %v108
    %111 = vbcast.lane.b32.xlu0 %v109, 256
    %v112 = vpop.permute.xlu0 %111
    %v113 = vlaneseq
    %v114 = vshrl.u32 %v113, 7
    %v115 = vsub.s32 6, %v114
    %v116 = vrot.slane %v66, %v115
    %118 = vbcast.lane.b32.xlu0 %v116, 256
    %v119 = vpop.permute.xlu0 %118
    %v120 = vlaneseq
    %v121 = vshrl.u32 %v120, 7
    %v122 = vsub.s32 7, %v121
    %v123 = vrot.slane %v66, %v122
    %125 = vbcast.lane.b32.xlu0 %v123, 256
    %v126 = vpop.permute.xlu0 %125
    %v127 = vmul.f32 %v58, %v77
    %v128 = vmul.f32 %v59, %v84
    %v129 = vmul.f32 %v60, %v91
    %v130 = vmul.f32 %v61, %v98
    %v131 = vmul.f32 %v62, %v105
    %v132 = vmul.f32 %v63, %v112
    %v133 = vmul.f32 %v64, %v119
    %v134 = vmul.f32 %v65, %v126
    %v135 = vrot.slane %v127, 4
    %v136 = vadd.f32 %v127, %v135
    %v137 = vrot.slane %v136, 2
    %v138 = vadd.f32 %v136, %v137
    %v139 = vrot.slane %v138, 1
    %v140 = vadd.f32 %v138, %v139
    %v141 = vrot.slane %v128, 4
    %v142 = vadd.f32 %v128, %v141
    %v143 = vrot.slane %v142, 2
    %v144 = vadd.f32 %v142, %v143
    %v145 = vrot.slane %v144, 1
    %v146 = vadd.f32 %v144, %v145
    %v147 = vrot.slane %v129, 4
    %v148 = vadd.f32 %v129, %v147
    %v149 = vrot.slane %v148, 2
    %v150 = vadd.f32 %v148, %v149
    %v151 = vrot.slane %v150, 1
    %v152 = vadd.f32 %v150, %v151
    %v153 = vrot.slane %v130, 4
    %v154 = vadd.f32 %v130, %v153
    %v155 = vrot.slane %v154, 2
    %v156 = vadd.f32 %v154, %v155
    %v157 = vrot.slane %v156, 1
    %v158 = vadd.f32 %v156, %v157
    %v159 = vrot.slane %v131, 4
    %v160 = vadd.f32 %v131, %v159
    %v161 = vrot.slane %v160, 2
    %v162 = vadd.f32 %v160, %v161
    %v163 = vrot.slane %v162, 1
    %v164 = vadd.f32 %v162, %v163
    %v165 = vrot.slane %v132, 4
    %v166 = vadd.f32 %v132, %v165
    %v167 = vrot.slane %v166, 2
    %v168 = vadd.f32 %v166, %v167
    %v169 = vrot.slane %v168, 1
    %v170 = vadd.f32 %v168, %v169
    %v171 = vrot.slane %v133, 4
    %v172 = vadd.f32 %v133, %v171
    %v173 = vrot.slane %v172, 2
    %v174 = vadd.f32 %v172, %v173
    %v175 = vrot.slane %v174, 1
    %v176 = vadd.f32 %v174, %v175
    %v177 = vrot.slane %v134, 4
    %v178 = vadd.f32 %v134, %v177
    %v179 = vrot.slane %v178, 2
    %v180 = vadd.f32 %v178, %v179
    %v181 = vrot.slane %v180, 1
    %v182 = vadd.f32 %v180, %v181
    %v184 = vrot.slane %v70, 1
    %v185 = vrot.slane %v70, 2
    %v186 = vrot.slane %v70, 3
    %v187 = vrot.slane %v70, 4
    %v188 = vrot.slane %v70, 5
    %v189 = vrot.slane %v70, 6
    %v190 = vrot.slane %v70, 7
    %v199 = vrcp.pop %v70
    %v200 = vmul.f32 %v140, %v199
    %v201 = vrcp.pop %v184
    %v202 = vmul.f32 %v146, %v201
    %v203 = vrcp.pop %v185
    %v204 = vmul.f32 %v152, %v203
    %v205 = vrcp.pop %v186
    %v206 = vmul.f32 %v158, %v205
    %v207 = vrcp.pop %v187
    %v208 = vmul.f32 %v164, %v207
    %v209 = vrcp.pop %v188
    %v210 = vmul.f32 %v170, %v209
    %v211 = vrcp.pop %v189
    %v212 = vmul.f32 %v176, %v211
    %v213 = vrcp.pop %v190
    %v214 = vmul.f32 %v182, %v213
    %v215 = vpack.c.bf16 %v200, %v200
    %v216 = vpack.c.bf16 %v202, %v202
    %v217 = vpack.c.bf16 %v204, %v204
    %v218 = vpack.c.bf16 %v206, %v206
    %v219 = vpack.c.bf16 %v208, %v208
    %v220 = vpack.c.bf16 %v210, %v210
    %v221 = vpack.c.bf16 %v212, %v212
    %v222 = vpack.c.bf16 %v214, %v214
    %v223 = vld [vmem:[#allocation7] sm:$0xf]
    %v224 = vld [vmem:[#allocation7 + $0x4] sm:$0xf]
    %v225 = vld [vmem:[#allocation7 + $0x8] sm:$0xf]
    %v226 = vld [vmem:[#allocation7 + $0xc] sm:$0xf]
    %v227 = vld [vmem:[#allocation7 + $0x10] sm:$0xf]
    %v228 = vld [vmem:[#allocation7 + $0x14] sm:$0xf]
    %v229 = vld [vmem:[#allocation7 + $0x18] sm:$0xf]
    %v230 = vld [vmem:[#allocation7 + $0x1c] sm:$0xf]
    %v231 = vld [vmem:[#allocation7 + $0x20] sm:$0xf]
    %v232 = vld [vmem:[#allocation7 + $0x24] sm:$0xf]
    %v233 = vld [vmem:[#allocation7 + $0x28] sm:$0xf]
    %v234 = vld [vmem:[#allocation7 + $0x2c] sm:$0xf]
    %v235 = vld [vmem:[#allocation7 + $0x30] sm:$0xf]
    %v236 = vld [vmem:[#allocation7 + $0x34] sm:$0xf]
    %v237 = vld [vmem:[#allocation7 + $0x38] sm:$0xf]
    %v238 = vld [vmem:[#allocation7 + $0x3c] sm:$0xf]
    %v239 = vld [vmem:[%s3] sm:$0x1]
    %v241 = vlaneseq
    %v242 = vshrl.u32 %v241, 7
    %v243 = vsub.s32 0, %v242
    %v244 = vrot.slane %v239, %v243
    %v254 = vunpack.c.l.b16 %v215
    %v255 = vunpack.c.l.b16 %v216
    %v256 = vunpack.c.l.b16 %v217
    %v257 = vunpack.c.l.b16 %v218
    %v258 = vunpack.c.l.b16 %v219
    %v259 = vunpack.c.l.b16 %v220
    %v260 = vunpack.c.l.b16 %v221
    %v261 = vunpack.c.l.b16 %v222
    %v262 = vrot.slane %v255, 7
    %vm263 = vcmask 1041409
    %v264 = vsel %vm263, %v262, %v254
    %v265 = vrot.slane %v256, 6
    %vm266 = vcmask 1042434
    %v267 = vsel %vm266, %v265, %v264
    %v268 = vrot.slane %v257, 5
    %vm269 = vcmask 1043459
    %v270 = vsel %vm269, %v268, %v267
    %v271 = vrot.slane %v258, 4
    %vm272 = vcmask 1044484
    %v273 = vsel %vm272, %v271, %v270
    %v274 = vrot.slane %v259, 3
    %vm275 = vcmask 1045509
    %v276 = vsel %vm275, %v274, %v273
    %v277 = vrot.slane %v260, 2
    %vm278 = vcmask 1046534
    %v279 = vsel %vm278, %v277, %v276
    %v280 = vrot.slane %v261, 1
    %vm281 = vcmask 1047559
    %v282 = vsel %vm281, %v280, %v279
    %v283 = vpack.c.b16 %v282, %v282
    %v301 = vunpack.c.l.b16 %v223
    %v302 = vunpack.c.l.b16 %v224
    %v303 = vunpack.c.l.b16 %v225
    %v304 = vunpack.c.l.b16 %v226
    %v305 = vunpack.c.l.b16 %v227
    %v306 = vunpack.c.l.b16 %v228
    %v307 = vunpack.c.l.b16 %v229
    %v308 = vunpack.c.l.b16 %v230
    %v309 = vunpack.c.l.b16 %v231
    %v310 = vunpack.c.l.b16 %v232
    %v311 = vunpack.c.l.b16 %v233
    %v312 = vunpack.c.l.b16 %v234
    %v313 = vunpack.c.l.b16 %v235
    %v314 = vunpack.c.l.b16 %v236
    %v315 = vunpack.c.l.b16 %v237
    %v316 = vunpack.c.l.b16 %v238
    %v317 = vpack.c.b16 %v302, %v301
    %v318 = vpack.c.b16 %v304, %v303
    %v319 = vpack.c.b16 %v306, %v305
    %v320 = vpack.c.b16 %v308, %v307
    %v321 = vpack.c.b16 %v310, %v309
    %v322 = vpack.c.b16 %v312, %v311
    %v323 = vpack.c.b16 %v314, %v313
    %v324 = vpack.c.b16 %v316, %v315
    %333 = vmatprep.subr.bf16.mxu0 0
    %334 = vmatpush1.bf16.msra.mxu0 %v317
    %335 = vmatprep.subr.bf16.mxu0 0
    %336 = vmatpush1.bf16.msra.mxu0 %v318
    %337 = vmatprep.subr.bf16.mxu0 0
    %338 = vmatpush1.bf16.msra.mxu0 %v319
    %339 = vmatprep.subr.bf16.mxu0 0
    %340 = vmatpush1.bf16.msra.mxu0 %v320
    %341 = vmatprep.subr.bf16.mxu0 0
    %342 = vmatpush1.bf16.msra.mxu0 %v321
    %343 = vmatprep.subr.bf16.mxu0 0
    %344 = vmatpush1.bf16.msra.mxu0 %v322
    %345 = vmatprep.subr.bf16.mxu0 0
    %346 = vmatpush1.bf16.msra.mxu0 %v323
    %347 = vmatprep.subr.bf16.mxu0 0
    %348 = vmatpush1.bf16.msra.mxu0 %v324
    %349 = vmatprep.subr.bf16.mxu0 0
    %350 = vmatpush1.bf16.msra.mxu0 0
    %351 = vmatprep.subr.bf16.mxu0 0
    %352 = vmatpush1.bf16.msra.mxu0 0
    %353 = vmatprep.subr.bf16.mxu0 0
    %354 = vmatpush1.bf16.msra.mxu0 0
    %355 = vmatprep.subr.bf16.mxu0 0
    %356 = vmatpush1.bf16.msra.mxu0 0
    %357 = vmatprep.subr.bf16.mxu0 0
    %358 = vmatpush1.bf16.msra.mxu0 0
    %359 = vmatprep.subr.bf16.mxu0 0
    %360 = vmatpush1.bf16.msra.mxu0 0
    %361 = vmatprep.subr.bf16.mxu0 0
    %362 = vmatpush1.bf16.msra.mxu0 0
    %363 = vmatprep.subr.bf16.mxu0 0
    %364 = vmatpush1.bf16.msra.mxu0 0
    %365 = vmatprep.mubr.bf16.mxu0 0
    %366 = vmatmul.mubr.bf16.gmra.mrb[0].mxu0 %v283
    %v367 = vpop.f32.mrb[0].mxu0
    %v368 = vadd.f32 %v244, %v367
    %v369 = vpop.f32.mrb[0].mxu0
    %v370 = vpop.f32.mrb[0].mxu0
    %v371 = vpop.f32.mrb[0].mxu0
    %372 = vdwg.mxu0
    %v373 = vtanh.pop %v368
    %374 = vst [vmem:[#allocation8] sm:$0xff] %v373
    // Predicated region
    $region30: #{tpu_custom_call.1} parent=1 // pred_check
      _
    $region31: #{tpu_custom_call.1} parent=1 // pred_check_branch
      %376 = sbr.rel (0) target = $region33
    $region32: #{tpu_custom_call.1} parent=1 // pred_region
      %s378 = ssub.s32 128, 128
      %379 = vsyncadd [#allocation4], %s378
      %s381 = sshll.u32 [#allocation8], 4
      %s382 = int_to_ptr.vmem [resolvable:$true] %s381
      %384 = dma.vmem_to_hbm [thread:$0]  %s382, 128, %s4, [#allocation4]
    $region33: #{tpu_custom_call.1} parent=1 // pred_fallthru
      _
    // Predicated region
    $region34: #{tpu_custom_call.1} parent=1 // pred_check
      _
    $region35: #{tpu_custom_call.1} parent=1 // pred_check_branch
      %386 = sbr.rel (0) target = $region37
    $region36: #{tpu_custom_call.1} parent=1 // pred_region
      %387 = dma.done [#allocation4], 128
    $region37: #{tpu_custom_call.1} parent=1 // pred_fallthru
      _
    %388 = vsyncpa [#allocation3], 1
    %389 = vsyncpa [#allocation6], 1
    %390 = vsyncpa [#allocation4], 1

</llo_original>
